<compile_context>
chip_gen: v7x
topology: tpu7x:2x2x1
jax: 0.10.0
libtpu: 0.0.40
codegen_flags: <defaults>
</compile_context>

<pallas_src>
import warnings
from functools import partial

import numpy as np
import jax
import jax.numpy as jnp
from jax.experimental import pallas as pl
from jax.experimental.pallas import tpu as pltpu  # noqa: F401  (TPU backend)

# Donation is expected to succeed (same shape/dtype, aliased custom call);
# suppress the benign "donated buffers were not usable" warning just in case.
warnings.filterwarnings("ignore", message="Some donated buffers were not usable")


def _passthrough_kernel(x_ref, o_ref):
    # The base Decoder defines no transformation; the on-chip "compute" is
    # the identity on X.  `state` never enters the kernel (no wasted DMA).
    o_ref[...] = x_ref[...]


def _lane_dense_shape(total_elems):
    """2-D view whose last (lane) dim is a multiple of 128 when possible."""
    if total_elems % 128 == 0:
        return (total_elems // 128, 128)
    # Fallback for odd sizes: single row.  block_shape == full array dims so
    # the (8,128) divisibility rule does not apply; stores may be lane-masked.
    return (1, total_elems)


def _pallas_identity_2d(x2d):
    """Identity copy of a 2-D, lane-dense array through a single VMEM block."""
    rows, lanes = x2d.shape
    nbytes = x2d.size * x2d.dtype.itemsize
    return pl.pallas_call(
        _passthrough_kernel,
        out_shape=jax.ShapeDtypeStruct((rows, lanes), x2d.dtype),
        # One block covering the full array: no grid, no per-step overhead.
        in_specs=[pl.BlockSpec((rows, lanes), lambda: (0, 0))],
        out_specs=pl.BlockSpec((rows, lanes), lambda: (0, 0)),
        # Identity-with-alias: with the jit-level donation below, the output
        # reuses the input HBM buffer (no defensive copy, no extra writeback).
        input_output_aliases={0: 0},
        # Pure data movement: one read + one write of the array.
        cost_estimate=pl.CostEstimate(
            flops=0, transcendentals=0, bytes_accessed=2 * nbytes
        ),
    )(x2d)


@partial(jax.jit, donate_argnums=(0,))
def _decoder_forward_hot_path(X):
    """Jitted, donated identity path: (B, S, H) -> (B, S, H)."""
    B, S, H = X.shape
    x2d = X.reshape(_lane_dense_shape(B * S * H))  # metadata-only reshape
    out2d = _pallas_identity_2d(x2d)
    return out2d.reshape(B, S, H)


class Decoder:
    """JAX/Pallas mirror of the base decoder interface."""

    def __init__(self, **kwargs):
        # No parameters in the base interface.
        pass

    def init_state(self, enc_outputs, *args):
        # TODO(synk): abstract in the reference module (NotImplementedError).
        # We pass encoder outputs through unchanged so forward() is callable.
        return enc_outputs

    def forward(self, X, state):
        # TODO(synk): abstract in the reference module (NotImplementedError).
        # Implemented as a jitted Pallas identity kernel over X; `state` is
        # returned unchanged and never DMA'd on-chip.  NOTE: X is donated —
        # the caller must not reuse the device buffer after this call.
        return _decoder_forward_hot_path(X), state

    def __call__(self, X, state):
        return self.forward(X, state)


if __name__ == "__main__":
    key = jax.random.PRNGKey(0)
    kx, ke = jax.random.split(key)

    batch, seq, hidden = 2, 8, 32
    X = jax.random.normal(kx, (batch, seq, hidden), dtype=jnp.float32)
    enc_outputs = jax.random.normal(ke, (batch, seq, hidden), dtype=jnp.float32)

    # X is donated into the jitted forward; keep a host copy for verification
    # (reading the donated device buffer afterwards would be invalid).
    X_host = np.asarray(X)

    dec = Decoder()
    state = dec.init_state(enc_outputs)
    out, new_state = dec(X, state)

    out = jax.block_until_ready(out)
    new_state = jax.block_until_ready(new_state)

    # Sanity: identity semantics of the placeholder hot path.
    assert out.shape == X_host.shape
    assert np.allclose(np.asarray(out), X_host)
    assert bool(jnp.allclose(new_state, enc_outputs))

    print("KERNEL_OK")
</pallas_src>

<mosaic_0001>
module attributes {stable_mosaic.version = 11 : i64} {
  func.func @_passthrough_kernel(%arg0: memref<4x128xf32, #tpu.memory_space<vmem>>, %arg1: memref<4x128xf32, #tpu.memory_space<vmem>>) attributes {dimension_semantics = [], scalar_prefetch = 0 : i64, scratch_operands = 0 : i64, tpu.core_type = #tpu.core_type<tc>} {
    %c0 = arith.constant 0 : index
    %c0_0 = arith.constant 0 : index
    %0 = vector.load %arg0[%c0, %c0_0] : memref<4x128xf32, #tpu.memory_space<vmem>>, vector<4x128xf32>
    %c0_1 = arith.constant 0 : index
    %c0_2 = arith.constant 0 : index
    %1 = vector.load %arg1[%c0_1, %c0_2] : memref<4x128xf32, #tpu.memory_space<vmem>>, vector<4x128xf32>
    tpu.vector_store %arg1[%c0_1, %c0_2], %0 {strides = array<i32>} : memref<4x128xf32, #tpu.memory_space<vmem>>, vector<4x128xf32>,
    return
  }
}

</mosaic_0001>

<llo_original>
// kernel: _decoder_forward_hot_path.1
$region0: #{_decoder_forward_hot_path.1}
  #allocation0 [shape = 'u32[]', space=smem, size = 0x4, offset = 0x4, fixed_abs, tag = 'smem constant byte address 0x4 - core index']
  #allocation1 [shape = 'u32[144,128]{1,0:T(1,128)}', space=vmem, size = 0x12000, scoped, tag = 'internal scratch']
  %s0 = inlined_call_operand.vmem [shape: f32[4,128], index: 0, kind: input, shape index: {}, may-alias: {0,1}]
  %s1 = inlined_call_operand.vmem [shape: f32[4,128], index: 1, kind: output, shape index: {}, may-alias: {0,1}]
  %s2 = sld [smem:[#allocation0]]
  $region14: #{_decoder_forward_hot_path.1} parent=0
    _
  %s4 = ssub.s32 1, %s2
  %s5 = scalar_select 0, %s4, %s2
  // Predicated region
  $region2: #{_decoder_forward_hot_path.1} parent=0 // pred_check
    _
  $region3: #{_decoder_forward_hot_path.1} parent=0 // pred_check_branch
    %7 = sbr.rel (0) target = $region5
  $region4: #{_decoder_forward_hot_path.1} parent=0 // pred_region
    _
  $region5: #{_decoder_forward_hot_path.1} parent=0 // pred_fallthru
    _
  %v8 = vld [vmem:[%s0] sm:$0xf]
  %9 = vst [vmem:[%s1] sm:$0xf] %v8
  // Predicated region
  $region6: #{_decoder_forward_hot_path.1} parent=0 // pred_check
    _
  $region7: #{_decoder_forward_hot_path.1} parent=0 // pred_check_branch
    %11 = sbr.rel (0) target = $region9
  $region8: #{_decoder_forward_hot_path.1} parent=0 // pred_region
    _
  $region9: #{_decoder_forward_hot_path.1} parent=0 // pred_fallthru
    _
  // Predicated region
  $region10: #{_decoder_forward_hot_path.1} parent=0 // pred_check
    _
  $region11: #{_decoder_forward_hot_path.1} parent=0 // pred_check_branch
    %13 = sbr.rel (0) target = $region13
  $region12: #{_decoder_forward_hot_path.1} parent=0 // pred_region
    _
  $region13: #{_decoder_forward_hot_path.1} parent=0 // pred_fallthru
    _

</llo_original>
